<compile_context>
chip_gen: v7x
topology: tpu7x:2x2x1
jax: 0.10.0
libtpu: 0.0.40
codegen_flags: <defaults>
</compile_context>

<pallas_src>
import jax
import jax.numpy as jnp
from jax import lax
from jax.experimental import pallas as pl
from jax.experimental.pallas import tpu as pltpu

MU_PAD_OUT = 8    # fc5 output columns padded 3 -> 8 (sublane-aligned, true width 3)
CHUNK = 256       # inner row-chunk: keeps per-chunk activations vreg-resident


def policy_net_kernel(x_ref,
                      w1_ref, b1_ref,
                      w2_ref, b2_ref,
                      w3_ref, b3_ref,
                      w4_ref, b4_ref,
                      w5_ref, b5t_ref,
                      mu_ref):
    bf16 = jnp.bfloat16
    f32 = jnp.float32

    tb = x_ref.shape[0]                 # static block shape
    chunk = min(CHUNK, tb)
    n_chunks = tb // chunk

    # Weights/biases are tiny (<100 KiB total) and VMEM-resident across steps.
    w1 = w1_ref[...]; b1 = b1_ref[...]
    w2 = w2_ref[...]; b2 = b2_ref[...]
    w3 = w3_ref[...]; b3 = b3_ref[...]
    w4 = w4_ref[...]; b4 = b4_ref[...]
    w5 = w5_ref[...]                    # (64, 8) bf16
    b5t = b5t_ref[...]                  # (8, 1)  f32

    def compute(xc):                    # xc: (chunk, state_dim) bf16
        h = jnp.maximum(jnp.dot(xc, w1, preferred_element_type=f32) + b1, 0.0)
        x1 = jnp.maximum(
            jnp.dot(h.astype(bf16), w2, preferred_element_type=f32) + b2, 0.0)
        x2 = jnp.maximum(
            jnp.dot(x1.astype(bf16), w3, preferred_element_type=f32) + b3 + x1, 0.0)
        x3 = jnp.maximum(
            jnp.dot(x2.astype(bf16), w4, preferred_element_type=f32) + b4, 0.0)
        # Final layer transposed: (8, chunk) = W5^T @ x3^T (batch rows on the
        # lane axis -> narrow, lane-dense, unmasked stores).
        out_t = lax.dot_general(
            w5, x3.astype(bf16),
            dimension_numbers=(((0,), (1,)), ((), ())),
            preferred_element_type=f32) + b5t
        return jax.nn.sigmoid(out_t)

    if n_chunks == 1:
        mu_ref[...] = compute(x_ref[...].astype(bf16)).astype(mu_ref.dtype)
    else:
        @pl.loop(0, n_chunks)
        def _(c):
            r0 = pl.multiple_of(c * chunk, chunk)
            xc = x_ref[pl.ds(r0, chunk), :].astype(bf16)
            mu_ref[:, pl.ds(r0, chunk)] = compute(xc).astype(mu_ref.dtype)


def _round_up(n, m):
    return ((n + m - 1) // m) * m


def _choose_tb(B, max_tile=1024):
    """Batch tile: multiple of 128 (lane-dense transposed output), bounded
    padding waste, and >=2 grid steps when the batch allows it (v7x: 2 TCs)."""
    best = 128
    for t in (256, 512, 1024):
        if t > max_tile:
            break
        b_pad = _round_up(B, t)
        if b_pad - B <= 0.125 * b_pad:
            best = t
    while best > 128 and _round_up(B, best) // best < 2 and B > 128:
        best //= 2
    return best


def prepare_params(params):
    """One-time (out-of-hot-path) preprocessing of PolicyNet parameters."""
    bf16 = jnp.bfloat16
    prep = {}
    for i in (1, 2, 3, 4):
        prep[f"w{i}"] = params[f"w{i}"].astype(bf16)
        prep[f"b{i}"] = params[f"b{i}"].astype(jnp.float32)
    pad = MU_PAD_OUT - params["w5"].shape[1]
    prep["w5"] = jnp.pad(params["w5"], ((0, 0), (0, pad))).astype(bf16)      # (64, 8)
    prep["b5t"] = (jnp.pad(params["b5"], ((0, 0), (0, pad)))
                   .astype(jnp.float32).reshape(MU_PAD_OUT, 1))              # (8, 1)
    # std = exp(clip(log_std, -20, 2)) is input-independent -> compute once here.
    prep["std"] = jnp.exp(jnp.clip(params["log_std"], -20.0, 2.0)).reshape(3)
    return prep


def policy_net_forward(x, prep, tile_b=None):
    """x: (B, state_dim) float32, prep: prepare_params(params).
    Returns (mu (B, 3) f32, std (3,) f32) via the Pallas kernel."""
    B, state_dim = x.shape
    x = x.astype(jnp.float32)           # bf16 cast happens inside the kernel

    tb = tile_b if tile_b is not None else _choose_tb(B)
    b_pad = _round_up(B, tb)
    if b_pad != B:
        x = jnp.pad(x, ((0, b_pad - B), (0, 0)))

    def const_spec(a):
        # Whole (tiny) array resident in VMEM, same block every grid step.
        return pl.BlockSpec(a.shape, lambda i: (0, 0))

    grid = (b_pad // tb,)
    mu_t = pl.pallas_call(
        policy_net_kernel,
        out_shape=jax.ShapeDtypeStruct((MU_PAD_OUT, b_pad), jnp.float32),
        grid_spec=pltpu.PrefetchScalarGridSpec(
            num_scalar_prefetch=0,
            grid=grid,
            in_specs=[
                pl.BlockSpec((tb, state_dim), lambda i: (i, 0)),
                const_spec(prep["w1"]), const_spec(prep["b1"]),
                const_spec(prep["w2"]), const_spec(prep["b2"]),
                const_spec(prep["w3"]), const_spec(prep["b3"]),
                const_spec(prep["w4"]), const_spec(prep["b4"]),
                const_spec(prep["w5"]), const_spec(prep["b5t"]),
            ],
            out_specs=pl.BlockSpec((MU_PAD_OUT, tb), lambda i: (0, i)),
        ),
        compiler_params=pltpu.CompilerParams(
            dimension_semantics=("parallel",),
        ),
    )(x, prep["w1"], prep["b1"], prep["w2"], prep["b2"], prep["w3"],
      prep["b3"], prep["w4"], prep["b4"], prep["w5"], prep["b5t"])

    mu = mu_t[:3, :B].T                 # narrow transpose, trivial post-op
    return mu, prep["std"]


def policy_net_apply(x, params, prep=None, min_pallas_batch=128):
    """Dispatcher: below min_pallas_batch a fused XLA MLP beats fixed
    pallas_call + wrapper overhead; above it, use the Pallas kernel."""
    if prep is None:
        prep = prepare_params(params)
    if x.shape[0] < min_pallas_batch:
        return reference_forward(x, params, matmul_dtype=jnp.bfloat16)
    return policy_net_forward(x, prep)


def init_params(state_dim, key):
    """Deterministic init. Linear weights created PyTorch-style (out, in) then
    transposed to (in, out) for the x @ W convention used in the kernel."""
    dims = [(state_dim, 64), (64, 128), (128, 128), (128, 64), (64, 3)]
    params = {}
    for i, (fin, fout) in enumerate(dims, start=1):
        key, kw, kb = jax.random.split(key, 3)
        bound = 1.0 / jnp.sqrt(fin)
        w_torch = jax.random.uniform(kw, (fout, fin), jnp.float32, -bound, bound)
        b = jax.random.uniform(kb, (fout,), jnp.float32, -bound, bound)
        params[f"w{i}"] = jnp.transpose(w_torch)          # (in, out) f32
        params[f"b{i}"] = b.reshape(1, fout)              # (1, out)  f32
    params["log_std"] = jnp.zeros((3,), jnp.float32)      # torch.zeros(3)
    return params


def reference_forward(x, params, matmul_dtype=jnp.float32):
    """Pure-JAX reference. matmul_dtype=jnp.bfloat16 mirrors the kernel's
    bf16-input / f32-accumulate matmuls for a tight comparison."""
    def mm(a, w):
        return jnp.dot(a.astype(matmul_dtype), w.astype(matmul_dtype),
                       preferred_element_type=jnp.float32)
    relu = lambda v: jnp.maximum(v, 0.0)
    h = relu(mm(x, params["w1"]) + params["b1"])
    x1 = relu(mm(h, params["w2"]) + params["b2"])
    x2 = relu(mm(x1, params["w3"]) + params["b3"] + x1)
    x3 = relu(mm(x2, params["w4"]) + params["b4"])
    out = mm(x3, params["w5"]) + params["b5"]
    mu = jax.nn.sigmoid(out)
    std = jnp.exp(jnp.clip(params["log_std"], -20.0, 2.0))
    return mu, std


if __name__ == "__main__":
    key = jax.random.PRNGKey(0)
    key, kx, kx2, kp = jax.random.split(key, 4)

    state_dim = 16
    params = init_params(state_dim, kp)
    prep = prepare_params(params)

    # --- Small-batch check (module-scale shapes), forced through the kernel ---
    batch = 8
    x = jax.random.normal(kx, (batch, state_dim), jnp.float32)
    mu, std = policy_net_forward(x, prep)
    jax.block_until_ready((mu, std))
    assert mu.shape == (batch, 3) and std.shape == (3,)

    mu_bf, std_ref = reference_forward(x, params, matmul_dtype=jnp.bfloat16)
    assert jnp.allclose(mu, mu_bf, atol=1e-4, rtol=1e-4), \
        float(jnp.max(jnp.abs(mu - mu_bf)))
    mu_f32, _ = reference_forward(x, params, matmul_dtype=jnp.float32)
    assert jnp.allclose(mu, mu_f32, atol=5e-2), \
        float(jnp.max(jnp.abs(mu - mu_f32)))
    assert jnp.allclose(std, std_ref, atol=1e-6, rtol=1e-6)

    # --- Larger batch: exercises the inner row-chunk loop (tb=512, 2 chunks) ---
    batch2 = 512
    x2 = jax.random.normal(kx2, (batch2, state_dim), jnp.float32)
    mu2, _ = policy_net_forward(x2, prep, tile_b=512)
    jax.block_until_ready(mu2)
    mu2_bf, _ = reference_forward(x2, params, matmul_dtype=jnp.bfloat16)
    assert mu2.shape == (batch2, 3)
    assert jnp.allclose(mu2, mu2_bf, atol=1e-4, rtol=1e-4), \
        float(jnp.max(jnp.abs(mu2 - mu2_bf)))

    print("KERNEL_OK")
</pallas_src>

<mosaic_0001>
module attributes {stable_mosaic.version = 11 : i64} {
  func.func @policy_net_kernel(%arg0: i32, %arg1: memref<128x16xf32, #tpu.memory_space<vmem>>, %arg2: memref<16x64xbf16, #tpu.memory_space<vmem>>, %arg3: memref<1x64xf32, #tpu.memory_space<vmem>>, %arg4: memref<64x128xbf16, #tpu.memory_space<vmem>>, %arg5: memref<1x128xf32, #tpu.memory_space<vmem>>, %arg6: memref<128x128xbf16, #tpu.memory_space<vmem>>, %arg7: memref<1x128xf32, #tpu.memory_space<vmem>>, %arg8: memref<128x64xbf16, #tpu.memory_space<vmem>>, %arg9: memref<1x64xf32, #tpu.memory_space<vmem>>, %arg10: memref<64x8xbf16, #tpu.memory_space<vmem>>, %arg11: memref<8x1xf32, #tpu.memory_space<vmem>>, %arg12: memref<8x128xf32, #tpu.memory_space<vmem>>) attributes {dimension_semantics = [#tpu.dimension_semantics<parallel>], iteration_bounds = array<i64: 1>, scalar_prefetch = 0 : i64, scratch_operands = 0 : i64, tpu.core_type = #tpu.core_type<tc>, window_params = [{transform_indices = @transform_0, window_bounds = array<i64: 128, 16>}, {pipeline_mode = #tpu.pipeline_mode<synchronous>, transform_indices = @transform_1, window_bounds = array<i64: 16, 64>}, {pipeline_mode = #tpu.pipeline_mode<synchronous>, transform_indices = @transform_2, window_bounds = array<i64: 1, 64>}, {pipeline_mode = #tpu.pipeline_mode<synchronous>, transform_indices = @transform_3, window_bounds = array<i64: 64, 128>}, {pipeline_mode = #tpu.pipeline_mode<synchronous>, transform_indices = @transform_4, window_bounds = array<i64: 1, 128>}, {pipeline_mode = #tpu.pipeline_mode<synchronous>, transform_indices = @transform_5, window_bounds = array<i64: 128, 128>}, {pipeline_mode = #tpu.pipeline_mode<synchronous>, transform_indices = @transform_6, window_bounds = array<i64: 1, 128>}, {pipeline_mode = #tpu.pipeline_mode<synchronous>, transform_indices = @transform_7, window_bounds = array<i64: 128, 64>}, {pipeline_mode = #tpu.pipeline_mode<synchronous>, transform_indices = @transform_8, window_bounds = array<i64: 1, 64>}, {pipeline_mode = #tpu.pipeline_mode<synchronous>, transform_indices = @transform_9, window_bounds = array<i64: 64, 8>}, {pipeline_mode = #tpu.pipeline_mode<synchronous>, transform_indices = @transform_10, window_bounds = array<i64: 8, 1>}, {transform_indices = @transform_11, window_bounds = array<i64: 8, 128>}]} {
    %c0 = arith.constant 0 : index
    %c0_0 = arith.constant 0 : index
    %0 = vector.load %arg2[%c0, %c0_0] : memref<16x64xbf16, #tpu.memory_space<vmem>>, vector<16x64xbf16>
    %c0_1 = arith.constant 0 : index
    %c0_2 = arith.constant 0 : index
    %1 = vector.load %arg3[%c0_1, %c0_2] : memref<1x64xf32, #tpu.memory_space<vmem>>, vector<1x64xf32>
    %c0_3 = arith.constant 0 : index
    %c0_4 = arith.constant 0 : index
    %2 = vector.load %arg4[%c0_3, %c0_4] : memref<64x128xbf16, #tpu.memory_space<vmem>>, vector<64x128xbf16>
    %c0_5 = arith.constant 0 : index
    %c0_6 = arith.constant 0 : index
    %3 = vector.load %arg5[%c0_5, %c0_6] : memref<1x128xf32, #tpu.memory_space<vmem>>, vector<1x128xf32>
    %c0_7 = arith.constant 0 : index
    %c0_8 = arith.constant 0 : index
    %4 = vector.load %arg6[%c0_7, %c0_8] : memref<128x128xbf16, #tpu.memory_space<vmem>>, vector<128x128xbf16>
    %c0_9 = arith.constant 0 : index
    %c0_10 = arith.constant 0 : index
    %5 = vector.load %arg7[%c0_9, %c0_10] : memref<1x128xf32, #tpu.memory_space<vmem>>, vector<1x128xf32>
    %c0_11 = arith.constant 0 : index
    %c0_12 = arith.constant 0 : index
    %6 = vector.load %arg8[%c0_11, %c0_12] : memref<128x64xbf16, #tpu.memory_space<vmem>>, vector<128x64xbf16>
    %c0_13 = arith.constant 0 : index
    %c0_14 = arith.constant 0 : index
    %7 = vector.load %arg9[%c0_13, %c0_14] : memref<1x64xf32, #tpu.memory_space<vmem>>, vector<1x64xf32>
    %c0_15 = arith.constant 0 : index
    %c0_16 = arith.constant 0 : index
    %8 = vector.load %arg10[%c0_15, %c0_16] : memref<64x8xbf16, #tpu.memory_space<vmem>>, vector<64x8xbf16>
    %c0_17 = arith.constant 0 : index
    %c0_18 = arith.constant 0 : index
    %9 = vector.load %arg11[%c0_17, %c0_18] : memref<8x1xf32, #tpu.memory_space<vmem>>, vector<8x1xf32>
    %c0_19 = arith.constant 0 : index
    %c0_20 = arith.constant 0 : index
    %10 = vector.load %arg1[%c0_19, %c0_20] : memref<128x16xf32, #tpu.memory_space<vmem>>, vector<128x16xf32>
    %11 = arith.truncf %10 : vector<128x16xf32> to vector<128x16xbf16>
    %cst = arith.constant dense<0.000000e+00> : vector<128x64xf32>
    %12 = tpu.matmul %11, %0, %cst {dimension_numbers = #tpu.dot_dimension_numbers<[1], [0], [0], [1], [0, 0, 1, 1], [], []>} : vector<128x16xbf16>, vector<16x64xbf16>, vector<128x64xf32> -> vector<128x64xf32>
    %13 = vector.broadcast %1 : vector<1x64xf32> to vector<128x64xf32>
    %14 = arith.addf %12, %13 : vector<128x64xf32>
    %cst_21 = arith.constant 0.000000e+00 : f32
    %15 = vector.broadcast %cst_21 : f32 to vector<128x64xf32>
    %16 = arith.maximumf %14, %15 : vector<128x64xf32>
    %17 = arith.truncf %16 : vector<128x64xf32> to vector<128x64xbf16>
    %cst_22 = arith.constant dense<0.000000e+00> : vector<128x128xf32>
    %18 = tpu.matmul %17, %2, %cst_22 {dimension_numbers = #tpu.dot_dimension_numbers<[1], [0], [0], [1], [0, 0, 1, 1], [], []>} : vector<128x64xbf16>, vector<64x128xbf16>, vector<128x128xf32> -> vector<128x128xf32>
    %19 = vector.broadcast %3 : vector<1x128xf32> to vector<128x128xf32>
    %20 = arith.addf %18, %19 : vector<128x128xf32>
    %cst_23 = arith.constant 0.000000e+00 : f32
    %21 = vector.broadcast %cst_23 : f32 to vector<128x128xf32>
    %22 = arith.maximumf %20, %21 : vector<128x128xf32>
    %23 = arith.truncf %22 : vector<128x128xf32> to vector<128x128xbf16>
    %cst_24 = arith.constant dense<0.000000e+00> : vector<128x128xf32>
    %24 = tpu.matmul %23, %4, %cst_24 {dimension_numbers = #tpu.dot_dimension_numbers<[1], [0], [0], [1], [0, 0, 1, 1], [], []>} : vector<128x128xbf16>, vector<128x128xbf16>, vector<128x128xf32> -> vector<128x128xf32>
    %25 = vector.broadcast %5 : vector<1x128xf32> to vector<128x128xf32>
    %26 = arith.addf %24, %25 : vector<128x128xf32>
    %27 = arith.addf %26, %22 : vector<128x128xf32>
    %cst_25 = arith.constant 0.000000e+00 : f32
    %28 = vector.broadcast %cst_25 : f32 to vector<128x128xf32>
    %29 = arith.maximumf %27, %28 : vector<128x128xf32>
    %30 = arith.truncf %29 : vector<128x128xf32> to vector<128x128xbf16>
    %cst_26 = arith.constant dense<0.000000e+00> : vector<128x64xf32>
    %31 = tpu.matmul %30, %6, %cst_26 {dimension_numbers = #tpu.dot_dimension_numbers<[1], [0], [0], [1], [0, 0, 1, 1], [], []>} : vector<128x128xbf16>, vector<128x64xbf16>, vector<128x64xf32> -> vector<128x64xf32>
    %32 = vector.broadcast %7 : vector<1x64xf32> to vector<128x64xf32>
    %33 = arith.addf %31, %32 : vector<128x64xf32>
    %cst_27 = arith.constant 0.000000e+00 : f32
    %34 = vector.broadcast %cst_27 : f32 to vector<128x64xf32>
    %35 = arith.maximumf %33, %34 : vector<128x64xf32>
    %36 = arith.truncf %35 : vector<128x64xf32> to vector<128x64xbf16>
    %cst_28 = arith.constant dense<0.000000e+00> : vector<8x128xf32>
    %37 = tpu.matmul %8, %36, %cst_28 {dimension_numbers = #tpu.dot_dimension_numbers<[0], [1], [1], [0], [0, 1, 1, 0], [], []>} : vector<64x8xbf16>, vector<128x64xbf16>, vector<8x128xf32> -> vector<8x128xf32>
    %38 = vector.broadcast %9 : vector<8x1xf32> to vector<8x128xf32>
    %39 = arith.addf %37, %38 : vector<8x128xf32>
    %40 = arith.negf %39 : vector<8x128xf32>
    %41 = math.exp %40 : vector<8x128xf32>
    %cst_29 = arith.constant 1.000000e+00 : f32
    %42 = vector.broadcast %cst_29 : f32 to vector<8x128xf32>
    %43 = arith.addf %42, %41 : vector<8x128xf32>
    %44 = arith.divf %42, %43 : vector<8x128xf32>
    %c0_30 = arith.constant 0 : index
    %c0_31 = arith.constant 0 : index
    %45 = vector.load %arg12[%c0_30, %c0_31] : memref<8x128xf32, #tpu.memory_space<vmem>>, vector<8x128xf32>
    tpu.vector_store %arg12[%c0_30, %c0_31], %44 {strides = array<i32>} : memref<8x128xf32, #tpu.memory_space<vmem>>, vector<8x128xf32>,
    return
  }
  func.func @transform_0(%arg0: i32) -> (i32, i32) {
    %c0_i32 = arith.constant 0 : i32
    %c0_i32_0 = arith.constant 0 : i32
    return %arg0, %c0_i32 : i32, i32
  }
  func.func @transform_1(%arg0: i32) -> (i32, i32) {
    %c0_i32 = arith.constant 0 : i32
    %c0_i32_0 = arith.constant 0 : i32
    %c0_i32_1 = arith.constant 0 : i32
    return %c0_i32, %c0_i32_0 : i32, i32
  }
  func.func @transform_2(%arg0: i32) -> (i32, i32) {
    %c0_i32 = arith.constant 0 : i32
    %c0_i32_0 = arith.constant 0 : i32
    %c0_i32_1 = arith.constant 0 : i32
    return %c0_i32, %c0_i32_0 : i32, i32
  }
  func.func @transform_3(%arg0: i32) -> (i32, i32) {
    %c0_i32 = arith.constant 0 : i32
    %c0_i32_0 = arith.constant 0 : i32
    %c0_i32_1 = arith.constant 0 : i32
    return %c0_i32, %c0_i32_0 : i32, i32
  }
  func.func @transform_4(%arg0: i32) -> (i32, i32) {
    %c0_i32 = arith.constant 0 : i32
    %c0_i32_0 = arith.constant 0 : i32
    %c0_i32_1 = arith.constant 0 : i32
    return %c0_i32, %c0_i32_0 : i32, i32
  }
  func.func @transform_5(%arg0: i32) -> (i32, i32) {
    %c0_i32 = arith.constant 0 : i32
    %c0_i32_0 = arith.constant 0 : i32
    %c0_i32_1 = arith.constant 0 : i32
    return %c0_i32, %c0_i32_0 : i32, i32
  }
  func.func @transform_6(%arg0: i32) -> (i32, i32) {
    %c0_i32 = arith.constant 0 : i32
    %c0_i32_0 = arith.constant 0 : i32
    %c0_i32_1 = arith.constant 0 : i32
    return %c0_i32, %c0_i32_0 : i32, i32
  }
  func.func @transform_7(%arg0: i32) -> (i32, i32) {
    %c0_i32 = arith.constant 0 : i32
    %c0_i32_0 = arith.constant 0 : i32
    %c0_i32_1 = arith.constant 0 : i32
    return %c0_i32, %c0_i32_0 : i32, i32
  }
  func.func @transform_8(%arg0: i32) -> (i32, i32) {
    %c0_i32 = arith.constant 0 : i32
    %c0_i32_0 = arith.constant 0 : i32
    %c0_i32_1 = arith.constant 0 : i32
    return %c0_i32, %c0_i32_0 : i32, i32
  }
  func.func @transform_9(%arg0: i32) -> (i32, i32) {
    %c0_i32 = arith.constant 0 : i32
    %c0_i32_0 = arith.constant 0 : i32
    %c0_i32_1 = arith.constant 0 : i32
    return %c0_i32, %c0_i32_0 : i32, i32
  }
  func.func @transform_10(%arg0: i32) -> (i32, i32) {
    %c0_i32 = arith.constant 0 : i32
    %c0_i32_0 = arith.constant 0 : i32
    %c0_i32_1 = arith.constant 0 : i32
    return %c0_i32, %c0_i32_0 : i32, i32
  }
  func.func @transform_11(%arg0: i32) -> (i32, i32) {
    %c0_i32 = arith.constant 0 : i32
    %c0_i32_0 = arith.constant 0 : i32
    return %c0_i32, %arg0 : i32, i32
  }
}

</mosaic_0001>

<llo_original>
// kernel: tpu_custom_call.1
$region0: #{tpu_custom_call.1}
  #allocation0 [shape = 'u32[]', space=smem, size = 0x4, offset = 0x4, fixed_abs, tag = 'smem constant byte address 0x4 - core index']
  #allocation1 [shape = 'u32[144,128]{1,0:T(1,128)}', space=vmem, size = 0x12000, scoped, tag = 'internal scratch']
  %s0 = inlined_call_operand.vmem [shape: f32[128,16], index: 0, kind: input, shape index: {}]
  %s1 = inlined_call_operand.vmem [shape: bf16[16,64], index: 1, kind: input, shape index: {}]
  %s2 = inlined_call_operand.vmem [shape: f32[1,64], index: 2, kind: input, shape index: {}]
  %s3 = inlined_call_operand.vmem [shape: bf16[64,128], index: 3, kind: input, shape index: {}]
  %s4 = inlined_call_operand.vmem [shape: f32[1,128], index: 4, kind: input, shape index: {}]
  %s5 = inlined_call_operand.vmem [shape: bf16[128,128], index: 5, kind: input, shape index: {}]
  %s6 = inlined_call_operand.vmem [shape: f32[1,128], index: 6, kind: input, shape index: {}]
  %s7 = inlined_call_operand.vmem [shape: bf16[128,64], index: 7, kind: input, shape index: {}]
  %s8 = inlined_call_operand.vmem [shape: f32[1,64], index: 8, kind: input, shape index: {}]
  %s9 = inlined_call_operand.vmem [shape: bf16[64,8], index: 9, kind: input, shape index: {}]
  %s10 = inlined_call_operand.vmem [shape: f32[8,1], index: 10, kind: input, shape index: {}]
  %s11 = inlined_call_operand.hbm [shape: f32[8,128], index: 11, kind: output, shape index: {}]
  %s12 = sld [smem:[#allocation0]]
  $region54: #{tpu_custom_call.1} parent=0
    _
  %s14 = ssub.s32 1, %s12
  %s15 = scalar_select 0, %s14, %s12
  $region1: #{tpu_custom_call.1} parent=0
    #allocation2 [shape = 'u8[4096]{0}', space=vmem, size = 0x1000, scoped, tag = 'output window, operand 0, single buffered']
    #allocation3 [shape = 's32[1]{0}', space=sflag, size = 0x4, scoped, tag = 'scoped memory for tpu_custom_call.1']
    %16 = vsyncpa [#allocation3], 0
    // Predicated region
    $region2: #{tpu_custom_call.1} parent=1 // pred_check
      _
    $region3: #{tpu_custom_call.1} parent=1 // pred_check_branch
      %18 = sbr.rel (0) target = $region5
    $region4: #{tpu_custom_call.1} parent=1 // pred_region
      _
    $region5: #{tpu_custom_call.1} parent=1 // pred_fallthru
      _
    // Predicated region
    $region6: #{tpu_custom_call.1} parent=1 // pred_check
      _
    $region7: #{tpu_custom_call.1} parent=1 // pred_check_branch
      %20 = sbr.rel (0) target = $region9
    $region8: #{tpu_custom_call.1} parent=1 // pred_region
      _
    $region9: #{tpu_custom_call.1} parent=1 // pred_fallthru
      _
    // Predicated region
    $region10: #{tpu_custom_call.1} parent=1 // pred_check
      _
    $region11: #{tpu_custom_call.1} parent=1 // pred_check_branch
      %22 = sbr.rel (0) target = $region13
    $region12: #{tpu_custom_call.1} parent=1 // pred_region
      _
    $region13: #{tpu_custom_call.1} parent=1 // pred_fallthru
      _
    // Predicated region
    $region14: #{tpu_custom_call.1} parent=1 // pred_check
      _
    $region15: #{tpu_custom_call.1} parent=1 // pred_check_branch
      %24 = sbr.rel (0) target = $region17
    $region16: #{tpu_custom_call.1} parent=1 // pred_region
      _
    $region17: #{tpu_custom_call.1} parent=1 // pred_fallthru
      _
    // Predicated region
    $region18: #{tpu_custom_call.1} parent=1 // pred_check
      _
    $region19: #{tpu_custom_call.1} parent=1 // pred_check_branch
      %26 = sbr.rel (0) target = $region21
    $region20: #{tpu_custom_call.1} parent=1 // pred_region
      _
    $region21: #{tpu_custom_call.1} parent=1 // pred_fallthru
      _
    // Predicated region
    $region22: #{tpu_custom_call.1} parent=1 // pred_check
      _
    $region23: #{tpu_custom_call.1} parent=1 // pred_check_branch
      %28 = sbr.rel (0) target = $region25
    $region24: #{tpu_custom_call.1} parent=1 // pred_region
      _
    $region25: #{tpu_custom_call.1} parent=1 // pred_fallthru
      _
    // Predicated region
    $region26: #{tpu_custom_call.1} parent=1 // pred_check
      _
    $region27: #{tpu_custom_call.1} parent=1 // pred_check_branch
      %30 = sbr.rel (0) target = $region29
    $region28: #{tpu_custom_call.1} parent=1 // pred_region
      _
    $region29: #{tpu_custom_call.1} parent=1 // pred_fallthru
      _
    // Predicated region
    $region30: #{tpu_custom_call.1} parent=1 // pred_check
      _
    $region31: #{tpu_custom_call.1} parent=1 // pred_check_branch
      %32 = sbr.rel (0) target = $region33
    $region32: #{tpu_custom_call.1} parent=1 // pred_region
      _
    $region33: #{tpu_custom_call.1} parent=1 // pred_fallthru
      _
    // Predicated region
    $region34: #{tpu_custom_call.1} parent=1 // pred_check
      _
    $region35: #{tpu_custom_call.1} parent=1 // pred_check_branch
      %34 = sbr.rel (0) target = $region37
    $region36: #{tpu_custom_call.1} parent=1 // pred_region
      _
    $region37: #{tpu_custom_call.1} parent=1 // pred_fallthru
      _
    // Predicated region
    $region38: #{tpu_custom_call.1} parent=1 // pred_check
      _
    $region39: #{tpu_custom_call.1} parent=1 // pred_check_branch
      %36 = sbr.rel (0) target = $region41
    $region40: #{tpu_custom_call.1} parent=1 // pred_region
      _
    $region41: #{tpu_custom_call.1} parent=1 // pred_fallthru
      _
    // Predicated region
    $region42: #{tpu_custom_call.1} parent=1 // pred_check
      _
    $region43: #{tpu_custom_call.1} parent=1 // pred_check_branch
      %38 = sbr.rel (0) target = $region45
    $region44: #{tpu_custom_call.1} parent=1 // pred_region
      _
    $region45: #{tpu_custom_call.1} parent=1 // pred_fallthru
      _
    %v40 = vld [vmem:[%s1] sm:$0xf]
    %v41 = vld [vmem:[%s1 + $0x4] sm:$0xf]
    %v42 = vld [vmem:[%s2] sm:$0x1]
    %v43 = vld [vmem:[%s3] sm:$0xf]
    %v44 = vld [vmem:[%s3 + $0x4] sm:$0xf]
    %v45 = vld [vmem:[%s3 + $0x8] sm:$0xf]
    %v46 = vld [vmem:[%s3 + $0xc] sm:$0xf]
    %v47 = vld [vmem:[%s3 + $0x10] sm:$0xf]
    %v48 = vld [vmem:[%s3 + $0x14] sm:$0xf]
    %v49 = vld [vmem:[%s3 + $0x18] sm:$0xf]
    %v50 = vld [vmem:[%s3 + $0x1c] sm:$0xf]
    %v51 = vld [vmem:[%s4] sm:$0x1]
    %v52 = vld [vmem:[%s5] sm:$0xf]
    %v53 = vld [vmem:[%s5 + $0x4] sm:$0xf]
    %v54 = vld [vmem:[%s5 + $0x8] sm:$0xf]
    %v55 = vld [vmem:[%s5 + $0xc] sm:$0xf]
    %v56 = vld [vmem:[%s5 + $0x10] sm:$0xf]
    %v57 = vld [vmem:[%s5 + $0x14] sm:$0xf]
    %v58 = vld [vmem:[%s5 + $0x18] sm:$0xf]
    %v59 = vld [vmem:[%s5 + $0x1c] sm:$0xf]
    %v60 = vld [vmem:[%s5 + $0x20] sm:$0xf]
    %v61 = vld [vmem:[%s5 + $0x24] sm:$0xf]
    %v62 = vld [vmem:[%s5 + $0x28] sm:$0xf]
    %v63 = vld [vmem:[%s5 + $0x2c] sm:$0xf]
    %v64 = vld [vmem:[%s5 + $0x30] sm:$0xf]
    %v65 = vld [vmem:[%s5 + $0x34] sm:$0xf]
    %v66 = vld [vmem:[%s5 + $0x38] sm:$0xf]
    %v67 = vld [vmem:[%s5 + $0x3c] sm:$0xf]
    %v68 = vld [vmem:[%s6] sm:$0x1]
    %v69 = vld [vmem:[%s7] sm:$0xf]
    %v70 = vld [vmem:[%s7 + $0x4] sm:$0xf]
    %v71 = vld [vmem:[%s7 + $0x8] sm:$0xf]
    %v72 = vld [vmem:[%s7 + $0xc] sm:$0xf]
    %v73 = vld [vmem:[%s7 + $0x10] sm:$0xf]
    %v74 = vld [vmem:[%s7 + $0x14] sm:$0xf]
    %v75 = vld [vmem:[%s7 + $0x18] sm:$0xf]
    %v76 = vld [vmem:[%s7 + $0x1c] sm:$0xf]
    %v77 = vld [vmem:[%s7 + $0x20] sm:$0xf]
    %v78 = vld [vmem:[%s7 + $0x24] sm:$0xf]
    %v79 = vld [vmem:[%s7 + $0x28] sm:$0xf]
    %v80 = vld [vmem:[%s7 + $0x2c] sm:$0xf]
    %v81 = vld [vmem:[%s7 + $0x30] sm:$0xf]
    %v82 = vld [vmem:[%s7 + $0x34] sm:$0xf]
    %v83 = vld [vmem:[%s7 + $0x38] sm:$0xf]
    %v84 = vld [vmem:[%s7 + $0x3c] sm:$0xf]
    %v85 = vld [vmem:[%s8] sm:$0x1]
    %v86 = vld [vmem:[%s9] sm:$0xf]
    %v87 = vld [vmem:[%s9 + $0x4] sm:$0xf]
    %v88 = vld [vmem:[%s9 + $0x8] sm:$0xf]
    %v89 = vld [vmem:[%s9 + $0xc] sm:$0xf]
    %v90 = vld [vmem:[%s9 + $0x10] sm:$0xf]
    %v91 = vld [vmem:[%s9 + $0x14] sm:$0xf]
    %v92 = vld [vmem:[%s9 + $0x18] sm:$0xf]
    %v93 = vld [vmem:[%s9 + $0x1c] sm:$0xf]
    %v94 = vld [vmem:[%s10] sm:$0xff]
    %v95 = vld [vmem:[%s0] sm:$0xff]
    %v96 = vld [vmem:[%s0 + $0x8] sm:$0xff]
    %v97 = vld [vmem:[%s0 + $0x10] sm:$0xff]
    %v98 = vld [vmem:[%s0 + $0x18] sm:$0xff]
    %v99 = vld [vmem:[%s0 + $0x20] sm:$0xff]
    %v100 = vld [vmem:[%s0 + $0x28] sm:$0xff]
    %v101 = vld [vmem:[%s0 + $0x30] sm:$0xff]
    %v102 = vld [vmem:[%s0 + $0x38] sm:$0xff]
    %v103 = vld [vmem:[%s0 + $0x40] sm:$0xff]
    %v104 = vld [vmem:[%s0 + $0x48] sm:$0xff]
    %v105 = vld [vmem:[%s0 + $0x50] sm:$0xff]
    %v106 = vld [vmem:[%s0 + $0x58] sm:$0xff]
    %v107 = vld [vmem:[%s0 + $0x60] sm:$0xff]
    %v108 = vld [vmem:[%s0 + $0x68] sm:$0xff]
    %v109 = vld [vmem:[%s0 + $0x70] sm:$0xff]
    %v110 = vld [vmem:[%s0 + $0x78] sm:$0xff]
    %v111 = vpack.c.bf16 %v96, %v95
    %v112 = vpack.c.bf16 %v98, %v97
    %v113 = vpack.c.bf16 %v100, %v99
    %v114 = vpack.c.bf16 %v102, %v101
    %v115 = vpack.c.bf16 %v104, %v103
    %v116 = vpack.c.bf16 %v106, %v105
    %v117 = vpack.c.bf16 %v108, %v107
    %v118 = vpack.c.bf16 %v110, %v109
    %v120 = vlaneseq
    %v121 = vshrl.u32 %v120, 7
    %v122 = vsub.s32 0, %v121
    %v123 = vrot.slane %v42, %v122
    %v127 = vunpack.c.l.b16 %v40
    %v128 = vunpack.c.l.b16 %v41
    %v129 = vpack.c.b16 %v128, %v127
    %vm131 = vcmask 130048
    %v133 = vsel %vm131, %v111, 0
    %v136 = vsel %vm131, %v112, 0
    %v139 = vsel %vm131, %v113, 0
    %v142 = vsel %vm131, %v114, 0
    %v145 = vsel %vm131, %v115, 0
    %v148 = vsel %vm131, %v116, 0
    %v151 = vsel %vm131, %v117, 0
    %v154 = vsel %vm131, %v118, 0
    %156 = vmatprep.subr.bf16.mxu0 0
    %157 = vmatpush1.bf16.msra.mxu0 %v129
    %158 = vmatprep.subr.bf16.mxu0 0
    %159 = vmatpush1.bf16.msra.mxu0 0
    %160 = vmatprep.subr.bf16.mxu0 0
    %161 = vmatpush1.bf16.msra.mxu0 0
    %162 = vmatprep.subr.bf16.mxu0 0
    %163 = vmatpush1.bf16.msra.mxu0 0
    %164 = vmatprep.subr.bf16.mxu0 0
    %165 = vmatpush1.bf16.msra.mxu0 0
    %166 = vmatprep.subr.bf16.mxu0 0
    %167 = vmatpush1.bf16.msra.mxu0 0
    %168 = vmatprep.subr.bf16.mxu0 0
    %169 = vmatpush1.bf16.msra.mxu0 0
    %170 = vmatprep.subr.bf16.mxu0 0
    %171 = vmatpush1.bf16.msra.mxu0 0
    %172 = vmatprep.subr.bf16.mxu0 0
    %173 = vmatpush1.bf16.msra.mxu0 0
    %174 = vmatprep.subr.bf16.mxu0 0
    %175 = vmatpush1.bf16.msra.mxu0 0
    %176 = vmatprep.subr.bf16.mxu0 0
    %177 = vmatpush1.bf16.msra.mxu0 0
    %178 = vmatprep.subr.bf16.mxu0 0
    %179 = vmatpush1.bf16.msra.mxu0 0
    %180 = vmatprep.subr.bf16.mxu0 0
    %181 = vmatpush1.bf16.msra.mxu0 0
    %182 = vmatprep.subr.bf16.mxu0 0
    %183 = vmatpush1.bf16.msra.mxu0 0
    %184 = vmatprep.subr.bf16.mxu0 0
    %185 = vmatpush1.bf16.msra.mxu0 0
    %186 = vmatprep.subr.bf16.mxu0 0
    %187 = vmatpush1.bf16.msra.mxu0 0
    %188 = vmatprep.mubr.bf16.mxu0 0
    %189 = vmatmul.mubr.bf16.gmra.mrb[0].mxu0 %v133
    %v190 = vpop.f32.mrb[0].mxu0
    %v191 = vadd.f32 %v123, %v190
    %v192 = vpop.f32.mrb[0].mxu0
    %v193 = vpop.f32.mrb[0].mxu0
    %v194 = vadd.f32 %v123, %v193
    %v195 = vpop.f32.mrb[0].mxu0
    %196 = vmatprep.mubr.bf16.mxu0 0
    %197 = vmatmul.mubr.bf16.gmra.mrb[0].mxu0 %v136
    %v198 = vpop.f32.mrb[0].mxu0
    %v199 = vadd.f32 %v123, %v198
    %v200 = vpop.f32.mrb[0].mxu0
    %v201 = vpop.f32.mrb[0].mxu0
    %v202 = vadd.f32 %v123, %v201
    %v203 = vpop.f32.mrb[0].mxu0
    %204 = vmatprep.mubr.bf16.mxu0 0
    %205 = vmatmul.mubr.bf16.gmra.mrb[0].mxu0 %v139
    %v206 = vpop.f32.mrb[0].mxu0
    %v207 = vadd.f32 %v123, %v206
    %v208 = vpop.f32.mrb[0].mxu0
    %v209 = vpop.f32.mrb[0].mxu0
    %v210 = vadd.f32 %v123, %v209
    %v211 = vpop.f32.mrb[0].mxu0
    %212 = vmatprep.mubr.bf16.mxu0 0
    %213 = vmatmul.mubr.bf16.gmra.mrb[0].mxu0 %v142
    %v214 = vpop.f32.mrb[0].mxu0
    %v215 = vadd.f32 %v123, %v214
    %v216 = vpop.f32.mrb[0].mxu0
    %v217 = vpop.f32.mrb[0].mxu0
    %v218 = vadd.f32 %v123, %v217
    %v219 = vpop.f32.mrb[0].mxu0
    %220 = vmatprep.mubr.bf16.mxu0 0
    %221 = vmatmul.mubr.bf16.gmra.mrb[0].mxu0 %v145
    %v222 = vpop.f32.mrb[0].mxu0
    %v223 = vadd.f32 %v123, %v222
    %v224 = vpop.f32.mrb[0].mxu0
    %v225 = vpop.f32.mrb[0].mxu0
    %v226 = vadd.f32 %v123, %v225
    %v227 = vpop.f32.mrb[0].mxu0
    %228 = vmatprep.mubr.bf16.mxu0 0
    %229 = vmatmul.mubr.bf16.gmra.mrb[0].mxu0 %v148
    %v230 = vpop.f32.mrb[0].mxu0
    %v231 = vadd.f32 %v123, %v230
    %v232 = vpop.f32.mrb[0].mxu0
    %v233 = vpop.f32.mrb[0].mxu0
    %v234 = vadd.f32 %v123, %v233
    %v235 = vpop.f32.mrb[0].mxu0
    %236 = vmatprep.mubr.bf16.mxu0 0
    %237 = vmatmul.mubr.bf16.gmra.mrb[0].mxu0 %v151
    %v238 = vpop.f32.mrb[0].mxu0
    %v239 = vadd.f32 %v123, %v238
    %v240 = vpop.f32.mrb[0].mxu0
    %v241 = vpop.f32.mrb[0].mxu0
    %v242 = vadd.f32 %v123, %v241
    %v243 = vpop.f32.mrb[0].mxu0
    %244 = vmatprep.mubr.bf16.mxu0 0
    %245 = vmatmul.mubr.bf16.gmra.mrb[0].mxu0 %v154
    %v246 = vpop.f32.mrb[0].mxu0
    %v247 = vadd.f32 %v123, %v246
    %v248 = vpop.f32.mrb[0].mxu0
    %v249 = vpop.f32.mrb[0].mxu0
    %v250 = vadd.f32 %v123, %v249
    %v251 = vpop.f32.mrb[0].mxu0
    %252 = vdwg.mxu0
    %v253 = vmax.f32 %v191, 0.0
    %v254 = vmax.f32 %v194, 0.0
    %v255 = vmax.f32 %v199, 0.0
    %v256 = vmax.f32 %v202, 0.0
    %v257 = vmax.f32 %v207, 0.0
    %v258 = vmax.f32 %v210, 0.0
    %v259 = vmax.f32 %v215, 0.0
    %v260 = vmax.f32 %v218, 0.0
    %v261 = vmax.f32 %v223, 0.0
    %v262 = vmax.f32 %v226, 0.0
    %v263 = vmax.f32 %v231, 0.0
    %v264 = vmax.f32 %v234, 0.0
    %v265 = vmax.f32 %v239, 0.0
    %v266 = vmax.f32 %v242, 0.0
    %v267 = vmax.f32 %v247, 0.0
    %v268 = vmax.f32 %v250, 0.0
    %v269 = vpack.c.bf16 %v254, %v253
    %v270 = vpack.c.bf16 %v256, %v255
    %v271 = vpack.c.bf16 %v258, %v257
    %v272 = vpack.c.bf16 %v260, %v259
    %v273 = vpack.c.bf16 %v262, %v261
    %v274 = vpack.c.bf16 %v264, %v263
    %v275 = vpack.c.bf16 %v266, %v265
    %v276 = vpack.c.bf16 %v268, %v267
    %v278 = vlaneseq
    %v279 = vshrl.u32 %v278, 7
    %v280 = vsub.s32 0, %v279
    %v281 = vrot.slane %v51, %v280
    %v291 = vunpack.c.l.b16 %v43
    %v292 = vunpack.c.l.b16 %v44
    %v293 = vunpack.c.l.b16 %v45
    %v294 = vunpack.c.l.b16 %v46
    %v295 = vunpack.c.l.b16 %v47
    %v296 = vunpack.c.l.b16 %v48
    %v297 = vunpack.c.l.b16 %v49
    %v298 = vunpack.c.l.b16 %v50
    %v299 = vpack.c.b16 %v292, %v291
    %v300 = vpack.c.b16 %v294, %v293
    %v301 = vpack.c.b16 %v296, %v295
    %v302 = vpack.c.b16 %v298, %v297
    %vm307 = vcmask 523264
    %v309 = vsel %vm307, %v269, 0
    %v312 = vsel %vm307, %v270, 0
    %v315 = vsel %vm307, %v271, 0
    %v318 = vsel %vm307, %v272, 0
    %v321 = vsel %vm307, %v273, 0
    %v324 = vsel %vm307, %v274, 0
    %v327 = vsel %vm307, %v275, 0
    %v330 = vsel %vm307, %v276, 0
    %332 = vmatprep.subr.bf16.mxu0 0
    %333 = vmatpush1.bf16.msra.mxu0 %v299
    %334 = vmatprep.subr.bf16.mxu0 0
    %335 = vmatpush1.bf16.msra.mxu0 %v300
    %336 = vmatprep.subr.bf16.mxu0 0
    %337 = vmatpush1.bf16.msra.mxu0 %v301
    %338 = vmatprep.subr.bf16.mxu0 0
    %339 = vmatpush1.bf16.msra.mxu0 %v302
    %340 = vmatprep.subr.bf16.mxu0 0
    %341 = vmatpush1.bf16.msra.mxu0 0
    %342 = vmatprep.subr.bf16.mxu0 0
    %343 = vmatpush1.bf16.msra.mxu0 0
    %344 = vmatprep.subr.bf16.mxu0 0
    %345 = vmatpush1.bf16.msra.mxu0 0
    %346 = vmatprep.subr.bf16.mxu0 0
    %347 = vmatpush1.bf16.msra.mxu0 0
    %348 = vmatprep.subr.bf16.mxu0 0
    %349 = vmatpush1.bf16.msra.mxu0 0
    %350 = vmatprep.subr.bf16.mxu0 0
    %351 = vmatpush1.bf16.msra.mxu0 0
    %352 = vmatprep.subr.bf16.mxu0 0
    %353 = vmatpush1.bf16.msra.mxu0 0
    %354 = vmatprep.subr.bf16.mxu0 0
    %355 = vmatpush1.bf16.msra.mxu0 0
    %356 = vmatprep.subr.bf16.mxu0 0
    %357 = vmatpush1.bf16.msra.mxu0 0
    %358 = vmatprep.subr.bf16.mxu0 0
    %359 = vmatpush1.bf16.msra.mxu0 0
    %360 = vmatprep.subr.bf16.mxu0 0
    %361 = vmatpush1.bf16.msra.mxu0 0
    %362 = vmatprep.subr.bf16.mxu0 0
    %363 = vmatpush1.bf16.msra.mxu0 0
    %364 = vmatprep.mubr.bf16.mxu0 0
    %365 = vmatmul.mubr.bf16.gmra.mrb[0].mxu0 %v309
    %v366 = vpop.f32.mrb[0].mxu0
    %v367 = vadd.f32 %v281, %v366
    %v368 = vpop.f32.mrb[0].mxu0
    %v369 = vpop.f32.mrb[0].mxu0
    %v370 = vadd.f32 %v281, %v369
    %v371 = vpop.f32.mrb[0].mxu0
    %372 = vmatprep.mubr.bf16.mxu0 0
    %373 = vmatmul.mubr.bf16.gmra.mrb[0].mxu0 %v312
    %v374 = vpop.f32.mrb[0].mxu0
    %v375 = vadd.f32 %v281, %v374
    %v376 = vpop.f32.mrb[0].mxu0
    %v377 = vpop.f32.mrb[0].mxu0
    %v378 = vadd.f32 %v281, %v377
    %v379 = vpop.f32.mrb[0].mxu0
    %380 = vmatprep.mubr.bf16.mxu0 0
    %381 = vmatmul.mubr.bf16.gmra.mrb[0].mxu0 %v315
    %v382 = vpop.f32.mrb[0].mxu0
    %v383 = vadd.f32 %v281, %v382
    %v384 = vpop.f32.mrb[0].mxu0
    %v385 = vpop.f32.mrb[0].mxu0
    %v386 = vadd.f32 %v281, %v385
    %v387 = vpop.f32.mrb[0].mxu0
    %388 = vmatprep.mubr.bf16.mxu0 0
    %389 = vmatmul.mubr.bf16.gmra.mrb[0].mxu0 %v318
    %v390 = vpop.f32.mrb[0].mxu0
    %v391 = vadd.f32 %v281, %v390
    %v392 = vpop.f32.mrb[0].mxu0
    %v393 = vpop.f32.mrb[0].mxu0
    %v394 = vadd.f32 %v281, %v393
    %v395 = vpop.f32.mrb[0].mxu0
    %396 = vmatprep.mubr.bf16.mxu0 0
    %397 = vmatmul.mubr.bf16.gmra.mrb[0].mxu0 %v321
    %v398 = vpop.f32.mrb[0].mxu0
    %v399 = vadd.f32 %v281, %v398
    %v400 = vpop.f32.mrb[0].mxu0
    %v401 = vpop.f32.mrb[0].mxu0
    %v402 = vadd.f32 %v281, %v401
    %v403 = vpop.f32.mrb[0].mxu0
    %404 = vmatprep.mubr.bf16.mxu0 0
    %405 = vmatmul.mubr.bf16.gmra.mrb[0].mxu0 %v324
    %v406 = vpop.f32.mrb[0].mxu0
    %v407 = vadd.f32 %v281, %v406
    %v408 = vpop.f32.mrb[0].mxu0
    %v409 = vpop.f32.mrb[0].mxu0
    %v410 = vadd.f32 %v281, %v409
    %v411 = vpop.f32.mrb[0].mxu0
    %412 = vmatprep.mubr.bf16.mxu0 0
    %413 = vmatmul.mubr.bf16.gmra.mrb[0].mxu0 %v327
    %v414 = vpop.f32.mrb[0].mxu0
    %v415 = vadd.f32 %v281, %v414
    %v416 = vpop.f32.mrb[0].mxu0
    %v417 = vpop.f32.mrb[0].mxu0
    %v418 = vadd.f32 %v281, %v417
    %v419 = vpop.f32.mrb[0].mxu0
    %420 = vmatprep.mubr.bf16.mxu0 0
    %421 = vmatmul.mubr.bf16.gmra.mrb[0].mxu0 %v330
    %v422 = vpop.f32.mrb[0].mxu0
    %v423 = vadd.f32 %v281, %v422
    %v424 = vpop.f32.mrb[0].mxu0
    %v425 = vpop.f32.mrb[0].mxu0
    %v426 = vadd.f32 %v281, %v425
    %v427 = vpop.f32.mrb[0].mxu0
    %428 = vdwg.mxu0
    %v429 = vmax.f32 %v367, 0.0
    %v430 = vmax.f32 %v370, 0.0
    %v431 = vmax.f32 %v375, 0.0
    %v432 = vmax.f32 %v378, 0.0
    %v433 = vmax.f32 %v383, 0.0
    %v434 = vmax.f32 %v386, 0.0
    %v435 = vmax.f32 %v391, 0.0
    %v436 = vmax.f32 %v394, 0.0
    %v437 = vmax.f32 %v399, 0.0
    %v438 = vmax.f32 %v402, 0.0
    %v439 = vmax.f32 %v407, 0.0
    %v440 = vmax.f32 %v410, 0.0
    %v441 = vmax.f32 %v415, 0.0
    %v442 = vmax.f32 %v418, 0.0
    %v443 = vmax.f32 %v423, 0.0
    %v444 = vmax.f32 %v426, 0.0
    %v445 = vpack.c.bf16 %v430, %v429
    %v446 = vpack.c.bf16 %v432, %v431
    %v447 = vpack.c.bf16 %v434, %v433
    %v448 = vpack.c.bf16 %v436, %v435
    %v449 = vpack.c.bf16 %v438, %v437
    %v450 = vpack.c.bf16 %v440, %v439
    %v451 = vpack.c.bf16 %v442, %v441
    %v452 = vpack.c.bf16 %v444, %v443
    %v454 = vlaneseq
    %v455 = vshrl.u32 %v454, 7
    %v456 = vsub.s32 0, %v455
    %v457 = vrot.slane %v68, %v456
    %v475 = vunpack.c.l.b16 %v52
    %v476 = vunpack.c.l.b16 %v53
    %v477 = vunpack.c.l.b16 %v54
    %v478 = vunpack.c.l.b16 %v55
    %v479 = vunpack.c.l.b16 %v56
    %v480 = vunpack.c.l.b16 %v57
    %v481 = vunpack.c.l.b16 %v58
    %v482 = vunpack.c.l.b16 %v59
    %v483 = vunpack.c.l.b16 %v60
    %v484 = vunpack.c.l.b16 %v61
    %v485 = vunpack.c.l.b16 %v62
    %v486 = vunpack.c.l.b16 %v63
    %v487 = vunpack.c.l.b16 %v64
    %v488 = vunpack.c.l.b16 %v65
    %v489 = vunpack.c.l.b16 %v66
    %v490 = vunpack.c.l.b16 %v67
    %v491 = vpack.c.b16 %v476, %v475
    %v492 = vpack.c.b16 %v478, %v477
    %v493 = vpack.c.b16 %v480, %v479
    %v494 = vpack.c.b16 %v482, %v481
    %v495 = vpack.c.b16 %v484, %v483
    %v496 = vpack.c.b16 %v486, %v485
    %v497 = vpack.c.b16 %v488, %v487
    %v498 = vpack.c.b16 %v490, %v489
    %507 = vmatprep.subr.bf16.mxu0 0
    %508 = vmatpush1.bf16.msra.mxu0 %v491
    %509 = vmatprep.subr.bf16.mxu0 0
    %510 = vmatpush1.bf16.msra.mxu0 %v492
    %511 = vmatprep.subr.bf16.mxu0 0
    %512 = vmatpush1.bf16.msra.mxu0 %v493
    %513 = vmatprep.subr.bf16.mxu0 0
    %514 = vmatpush1.bf16.msra.mxu0 %v494
    %515 = vmatprep.subr.bf16.mxu0 0
    %516 = vmatpush1.bf16.msra.mxu0 %v495
    %517 = vmatprep.subr.bf16.mxu0 0
    %518 = vmatpush1.bf16.msra.mxu0 %v496
    %519 = vmatprep.subr.bf16.mxu0 0
    %520 = vmatpush1.bf16.msra.mxu0 %v497
    %521 = vmatprep.subr.bf16.mxu0 0
    %522 = vmatpush1.bf16.msra.mxu0 %v498
    %523 = vmatprep.subr.bf16.mxu0 0
    %524 = vmatpush1.bf16.msra.mxu0 0
    %525 = vmatprep.subr.bf16.mxu0 0
    %526 = vmatpush1.bf16.msra.mxu0 0
    %527 = vmatprep.subr.bf16.mxu0 0
    %528 = vmatpush1.bf16.msra.mxu0 0
    %529 = vmatprep.subr.bf16.mxu0 0
    %530 = vmatpush1.bf16.msra.mxu0 0
    %531 = vmatprep.subr.bf16.mxu0 0
    %532 = vmatpush1.bf16.msra.mxu0 0
    %533 = vmatprep.subr.bf16.mxu0 0
    %534 = vmatpush1.bf16.msra.mxu0 0
    %535 = vmatprep.subr.bf16.mxu0 0
    %536 = vmatpush1.bf16.msra.mxu0 0
    %537 = vmatprep.subr.bf16.mxu0 0
    %538 = vmatpush1.bf16.msra.mxu0 0
    %539 = vmatprep.mubr.bf16.mxu0 0
    %540 = vmatmul.mubr.bf16.gmra.mrb[0].mxu0 %v445
    %v541 = vpop.f32.mrb[0].mxu0
    %v542 = vadd.f32 %v457, %v541
    %v543 = vpop.f32.mrb[0].mxu0
    %v544 = vpop.f32.mrb[0].mxu0
    %v545 = vadd.f32 %v457, %v544
    %v546 = vpop.f32.mrb[0].mxu0
    %547 = vmatprep.mubr.bf16.mxu0 0
    %548 = vmatmul.mubr.bf16.gmra.mrb[0].mxu0 %v446
    %v549 = vpop.f32.mrb[0].mxu0
    %v550 = vadd.f32 %v457, %v549
    %v551 = vpop.f32.mrb[0].mxu0
    %v552 = vpop.f32.mrb[0].mxu0
    %v553 = vadd.f32 %v457, %v552
    %v554 = vpop.f32.mrb[0].mxu0
    %555 = vmatprep.mubr.bf16.mxu0 0
    %556 = vmatmul.mubr.bf16.gmra.mrb[0].mxu0 %v447
    %v557 = vpop.f32.mrb[0].mxu0
    %v558 = vadd.f32 %v457, %v557
    %v559 = vpop.f32.mrb[0].mxu0
    %v560 = vpop.f32.mrb[0].mxu0
    %v561 = vadd.f32 %v457, %v560
    %v562 = vpop.f32.mrb[0].mxu0
    %563 = vmatprep.mubr.bf16.mxu0 0
    %564 = vmatmul.mubr.bf16.gmra.mrb[0].mxu0 %v448
    %v565 = vpop.f32.mrb[0].mxu0
    %v566 = vadd.f32 %v457, %v565
    %v567 = vpop.f32.mrb[0].mxu0
    %v568 = vpop.f32.mrb[0].mxu0
    %v569 = vadd.f32 %v457, %v568
    %v570 = vpop.f32.mrb[0].mxu0
    %571 = vmatprep.mubr.bf16.mxu0 0
    %572 = vmatmul.mubr.bf16.gmra.mrb[0].mxu0 %v449
    %v573 = vpop.f32.mrb[0].mxu0
    %v574 = vadd.f32 %v457, %v573
    %v575 = vpop.f32.mrb[0].mxu0
    %v576 = vpop.f32.mrb[0].mxu0
    %v577 = vadd.f32 %v457, %v576
    %v578 = vpop.f32.mrb[0].mxu0
    %579 = vmatprep.mubr.bf16.mxu0 0
    %580 = vmatmul.mubr.bf16.gmra.mrb[0].mxu0 %v450
    %v581 = vpop.f32.mrb[0].mxu0
    %v582 = vadd.f32 %v457, %v581
    %v583 = vpop.f32.mrb[0].mxu0
    %v584 = vpop.f32.mrb[0].mxu0
    %v585 = vadd.f32 %v457, %v584
    %v586 = vpop.f32.mrb[0].mxu0
    %587 = vmatprep.mubr.bf16.mxu0 0
    %588 = vmatmul.mubr.bf16.gmra.mrb[0].mxu0 %v451
    %v589 = vpop.f32.mrb[0].mxu0
    %v590 = vadd.f32 %v457, %v589
    %v591 = vpop.f32.mrb[0].mxu0
    %v592 = vpop.f32.mrb[0].mxu0
    %v593 = vadd.f32 %v457, %v592
    %v594 = vpop.f32.mrb[0].mxu0
    %595 = vmatprep.mubr.bf16.mxu0 0
    %596 = vmatmul.mubr.bf16.gmra.mrb[0].mxu0 %v452
    %v597 = vpop.f32.mrb[0].mxu0
    %v598 = vadd.f32 %v457, %v597
    %v599 = vpop.f32.mrb[0].mxu0
    %v600 = vpop.f32.mrb[0].mxu0
    %v601 = vadd.f32 %v457, %v600
    %v602 = vpop.f32.mrb[0].mxu0
    %603 = vdwg.mxu0
    %v604 = vadd.f32 %v542, %v429
    %v605 = vadd.f32 %v545, %v430
    %v606 = vadd.f32 %v550, %v431
    %v607 = vadd.f32 %v553, %v432
    %v608 = vadd.f32 %v558, %v433
    %v609 = vadd.f32 %v561, %v434
    %v610 = vadd.f32 %v566, %v435
    %v611 = vadd.f32 %v569, %v436
    %v612 = vadd.f32 %v574, %v437
    %v613 = vadd.f32 %v577, %v438
    %v614 = vadd.f32 %v582, %v439
    %v615 = vadd.f32 %v585, %v440
    %v616 = vadd.f32 %v590, %v441
    %v617 = vadd.f32 %v593, %v442
    %v618 = vadd.f32 %v598, %v443
    %v619 = vadd.f32 %v601, %v444
    %v620 = vmax.f32 %v604, 0.0
    %v621 = vmax.f32 %v605, 0.0
    %v622 = vmax.f32 %v606, 0.0
    %v623 = vmax.f32 %v607, 0.0
    %v624 = vmax.f32 %v608, 0.0
    %v625 = vmax.f32 %v609, 0.0
    %v626 = vmax.f32 %v610, 0.0
    %v627 = vmax.f32 %v611, 0.0
    %v628 = vmax.f32 %v612, 0.0
    %v629 = vmax.f32 %v613, 0.0
    %v630 = vmax.f32 %v614, 0.0
    %v631 = vmax.f32 %v615, 0.0
    %v632 = vmax.f32 %v616, 0.0
    %v633 = vmax.f32 %v617, 0.0
    %v634 = vmax.f32 %v618, 0.0
    %v635 = vmax.f32 %v619, 0.0
    %v636 = vpack.c.bf16 %v621, %v620
    %v637 = vpack.c.bf16 %v623, %v622
    %v638 = vpack.c.bf16 %v625, %v624
    %v639 = vpack.c.bf16 %v627, %v626
    %v640 = vpack.c.bf16 %v629, %v628
    %v641 = vpack.c.bf16 %v631, %v630
    %v642 = vpack.c.bf16 %v633, %v632
    %v643 = vpack.c.bf16 %v635, %v634
    %v645 = vlaneseq
    %v646 = vshrl.u32 %v645, 7
    %v647 = vsub.s32 0, %v646
    %v648 = vrot.slane %v85, %v647
    %v666 = vunpack.c.l.b16 %v69
    %v667 = vunpack.c.l.b16 %v70
    %v668 = vunpack.c.l.b16 %v71
    %v669 = vunpack.c.l.b16 %v72
    %v670 = vunpack.c.l.b16 %v73
    %v671 = vunpack.c.l.b16 %v74
    %v672 = vunpack.c.l.b16 %v75
    %v673 = vunpack.c.l.b16 %v76
    %v674 = vunpack.c.l.b16 %v77
    %v675 = vunpack.c.l.b16 %v78
    %v676 = vunpack.c.l.b16 %v79
    %v677 = vunpack.c.l.b16 %v80
    %v678 = vunpack.c.l.b16 %v81
    %v679 = vunpack.c.l.b16 %v82
    %v680 = vunpack.c.l.b16 %v83
    %v681 = vunpack.c.l.b16 %v84
    %v682 = vpack.c.b16 %v667, %v666
    %v683 = vpack.c.b16 %v669, %v668
    %v684 = vpack.c.b16 %v671, %v670
    %v685 = vpack.c.b16 %v673, %v672
    %v686 = vpack.c.b16 %v675, %v674
    %v687 = vpack.c.b16 %v677, %v676
    %v688 = vpack.c.b16 %v679, %v678
    %v689 = vpack.c.b16 %v681, %v680
    %698 = vmatprep.subr.bf16.mxu0 0
    %699 = vmatpush1.bf16.msra.mxu0 %v682
    %700 = vmatprep.subr.bf16.mxu0 0
    %701 = vmatpush1.bf16.msra.mxu0 %v683
    %702 = vmatprep.subr.bf16.mxu0 0
    %703 = vmatpush1.bf16.msra.mxu0 %v684
    %704 = vmatprep.subr.bf16.mxu0 0
    %705 = vmatpush1.bf16.msra.mxu0 %v685
    %706 = vmatprep.subr.bf16.mxu0 0
    %707 = vmatpush1.bf16.msra.mxu0 %v686
    %708 = vmatprep.subr.bf16.mxu0 0
    %709 = vmatpush1.bf16.msra.mxu0 %v687
    %710 = vmatprep.subr.bf16.mxu0 0
    %711 = vmatpush1.bf16.msra.mxu0 %v688
    %712 = vmatprep.subr.bf16.mxu0 0
    %713 = vmatpush1.bf16.msra.mxu0 %v689
    %714 = vmatprep.subr.bf16.mxu0 0
    %715 = vmatpush1.bf16.msra.mxu0 0
    %716 = vmatprep.subr.bf16.mxu0 0
    %717 = vmatpush1.bf16.msra.mxu0 0
    %718 = vmatprep.subr.bf16.mxu0 0
    %719 = vmatpush1.bf16.msra.mxu0 0
    %720 = vmatprep.subr.bf16.mxu0 0
    %721 = vmatpush1.bf16.msra.mxu0 0
    %722 = vmatprep.subr.bf16.mxu0 0
    %723 = vmatpush1.bf16.msra.mxu0 0
    %724 = vmatprep.subr.bf16.mxu0 0
    %725 = vmatpush1.bf16.msra.mxu0 0
    %726 = vmatprep.subr.bf16.mxu0 0
    %727 = vmatpush1.bf16.msra.mxu0 0
    %728 = vmatprep.subr.bf16.mxu0 0
    %729 = vmatpush1.bf16.msra.mxu0 0
    %730 = vmatprep.mubr.bf16.mxu0 0
    %731 = vmatmul.mubr.bf16.gmra.mrb[0].mxu0 %v636
    %v732 = vpop.f32.mrb[0].mxu0
    %v733 = vadd.f32 %v648, %v732
    %v734 = vpop.f32.mrb[0].mxu0
    %v735 = vpop.f32.mrb[0].mxu0
    %v736 = vadd.f32 %v648, %v735
    %v737 = vpop.f32.mrb[0].mxu0
    %738 = vmatprep.mubr.bf16.mxu0 0
    %739 = vmatmul.mubr.bf16.gmra.mrb[0].mxu0 %v637
    %v740 = vpop.f32.mrb[0].mxu0
    %v741 = vadd.f32 %v648, %v740
    %v742 = vpop.f32.mrb[0].mxu0
    %v743 = vpop.f32.mrb[0].mxu0
    %v744 = vadd.f32 %v648, %v743
    %v745 = vpop.f32.mrb[0].mxu0
    %746 = vmatprep.mubr.bf16.mxu0 0
    %747 = vmatmul.mubr.bf16.gmra.mrb[0].mxu0 %v638
    %v748 = vpop.f32.mrb[0].mxu0
    %v749 = vadd.f32 %v648, %v748
    %v750 = vpop.f32.mrb[0].mxu0
    %v751 = vpop.f32.mrb[0].mxu0
    %v752 = vadd.f32 %v648, %v751
    %v753 = vpop.f32.mrb[0].mxu0
    %754 = vmatprep.mubr.bf16.mxu0 0
    %755 = vmatmul.mubr.bf16.gmra.mrb[0].mxu0 %v639
    %v756 = vpop.f32.mrb[0].mxu0
    %v757 = vadd.f32 %v648, %v756
    %v758 = vpop.f32.mrb[0].mxu0
    %v759 = vpop.f32.mrb[0].mxu0
    %v760 = vadd.f32 %v648, %v759
    %v761 = vpop.f32.mrb[0].mxu0
    %762 = vmatprep.mubr.bf16.mxu0 0
    %763 = vmatmul.mubr.bf16.gmra.mrb[0].mxu0 %v640
    %v764 = vpop.f32.mrb[0].mxu0
    %v765 = vadd.f32 %v648, %v764
    %v766 = vpop.f32.mrb[0].mxu0
    %v767 = vpop.f32.mrb[0].mxu0
    %v768 = vadd.f32 %v648, %v767
    %v769 = vpop.f32.mrb[0].mxu0
    %770 = vmatprep.mubr.bf16.mxu0 0
    %771 = vmatmul.mubr.bf16.gmra.mrb[0].mxu0 %v641
    %v772 = vpop.f32.mrb[0].mxu0
    %v773 = vadd.f32 %v648, %v772
    %v774 = vpop.f32.mrb[0].mxu0
    %v775 = vpop.f32.mrb[0].mxu0
    %v776 = vadd.f32 %v648, %v775
    %v777 = vpop.f32.mrb[0].mxu0
    %778 = vmatprep.mubr.bf16.mxu0 0
    %779 = vmatmul.mubr.bf16.gmra.mrb[0].mxu0 %v642
    %v780 = vpop.f32.mrb[0].mxu0
    %v781 = vadd.f32 %v648, %v780
    %v782 = vpop.f32.mrb[0].mxu0
    %v783 = vpop.f32.mrb[0].mxu0
    %v784 = vadd.f32 %v648, %v783
    %v785 = vpop.f32.mrb[0].mxu0
    %786 = vmatprep.mubr.bf16.mxu0 0
    %787 = vmatmul.mubr.bf16.gmra.mrb[0].mxu0 %v643
    %v788 = vpop.f32.mrb[0].mxu0
    %v789 = vadd.f32 %v648, %v788
    %v790 = vpop.f32.mrb[0].mxu0
    %v791 = vpop.f32.mrb[0].mxu0
    %v792 = vadd.f32 %v648, %v791
    %v793 = vpop.f32.mrb[0].mxu0
    %794 = vdwg.mxu0
    %v795 = vmax.f32 %v733, 0.0
    %v796 = vmax.f32 %v736, 0.0
    %v797 = vmax.f32 %v741, 0.0
    %v798 = vmax.f32 %v744, 0.0
    %v799 = vmax.f32 %v749, 0.0
    %v800 = vmax.f32 %v752, 0.0
    %v801 = vmax.f32 %v757, 0.0
    %v802 = vmax.f32 %v760, 0.0
    %v803 = vmax.f32 %v765, 0.0
    %v804 = vmax.f32 %v768, 0.0
    %v805 = vmax.f32 %v773, 0.0
    %v806 = vmax.f32 %v776, 0.0
    %v807 = vmax.f32 %v781, 0.0
    %v808 = vmax.f32 %v784, 0.0
    %v809 = vmax.f32 %v789, 0.0
    %v810 = vmax.f32 %v792, 0.0
    %v811 = vpack.c.bf16 %v796, %v795
    %v812 = vpack.c.bf16 %v798, %v797
    %v813 = vpack.c.bf16 %v800, %v799
    %v814 = vpack.c.bf16 %v802, %v801
    %v815 = vpack.c.bf16 %v804, %v803
    %v816 = vpack.c.bf16 %v806, %v805
    %v817 = vpack.c.bf16 %v808, %v807
    %v818 = vpack.c.bf16 %v810, %v809
    %820 = vset.pattern.permute.xlu0 0
    %821 = vperm.xlu0 %820, %v94
    %v822 = vpop.permute.xlu0 %821
    %v832 = vunpack.c.l.b16 %v86
    %v833 = vunpack.c.l.b16 %v87
    %v834 = vunpack.c.l.b16 %v88
    %v835 = vunpack.c.l.b16 %v89
    %v836 = vunpack.c.l.b16 %v90
    %v837 = vunpack.c.l.b16 %v91
    %v838 = vunpack.c.l.b16 %v92
    %v839 = vunpack.c.l.b16 %v93
    %v840 = vpack.c.b16 %v833, %v832
    %v841 = vpack.c.b16 %v835, %v834
    %v842 = vpack.c.b16 %v837, %v836
    %v843 = vpack.c.b16 %v839, %v838
    %848 = vxpose.xlu0.c.b16.start [1/8] %v840, 128
    %849 = vxpose.xlu0.c.b16.cont [2/8] %v841, 128
    %850 = vxpose.xlu0.c.b16.cont [3/8] %v842, 128
    %851 = vxpose.xlu0.c.b16.cont [4/8] %v843, 128
    %852 = vxpose.xlu0.c.b16.cont [5/8] 0, 128
    %853 = vxpose.xlu0.c.b16.cont [6/8] 0, 128
    %854 = vxpose.xlu0.c.b16.cont [7/8] 0, 128
    %855 = vxpose.xlu0.c.b16.end [8/8] 0, 128
    %v856 = vpop.trf.xlu0
    %v857 = vpop.trf.xlu0
    %v858 = vpop.trf.xlu0
    %v859 = vpop.trf.xlu0
    %v860 = vpop.trf.xlu0
    %v861 = vpop.trf.xlu0
    %v862 = vpop.trf.xlu0
    %v863 = vpop.trf.xlu0
    %v865 = vsel %vm307, %v856, 0
    %v868 = vsel %vm307, %v811, 0
    %v871 = vsel %vm307, %v812, 0
    %v874 = vsel %vm307, %v813, 0
    %v877 = vsel %vm307, %v814, 0
    %v880 = vsel %vm307, %v815, 0
    %v883 = vsel %vm307, %v816, 0
    %v886 = vsel %vm307, %v817, 0
    %v889 = vsel %vm307, %v818, 0
    %891 = vmatprep.subr.bf16.mxu0 0
    %892 = vmatpush1.bf16.xpose.msra.mxu0 %v868
    %893 = vmatprep.subr.bf16.mxu0 0
    %894 = vmatpush1.bf16.xpose.msra.mxu0 %v871
    %895 = vmatprep.subr.bf16.mxu0 0
    %896 = vmatpush1.bf16.xpose.msra.mxu0 %v874
    %897 = vmatprep.subr.bf16.mxu0 0
    %898 = vmatpush1.bf16.xpose.msra.mxu0 %v877
    %899 = vmatprep.subr.bf16.mxu0 0
    %900 = vmatpush1.bf16.xpose.msra.mxu0 %v880
    %901 = vmatprep.subr.bf16.mxu0 0
    %902 = vmatpush1.bf16.xpose.msra.mxu0 %v883
    %903 = vmatprep.subr.bf16.mxu0 0
    %904 = vmatpush1.bf16.xpose.msra.mxu0 %v886
    %905 = vmatprep.subr.bf16.mxu0 0
    %906 = vmatpush1.bf16.xpose.msra.mxu0 %v889
    %907 = vmatprep.subr.bf16.mxu0 0
    %908 = vmatpush1.bf16.xpose.msra.mxu0 0
    %909 = vmatprep.subr.bf16.mxu0 0
    %910 = vmatpush1.bf16.xpose.msra.mxu0 0
    %911 = vmatprep.subr.bf16.mxu0 0
    %912 = vmatpush1.bf16.xpose.msra.mxu0 0
    %913 = vmatprep.subr.bf16.mxu0 0
    %914 = vmatpush1.bf16.xpose.msra.mxu0 0
    %915 = vmatprep.subr.bf16.mxu0 0
    %916 = vmatpush1.bf16.xpose.msra.mxu0 0
    %917 = vmatprep.subr.bf16.mxu0 0
    %918 = vmatpush1.bf16.xpose.msra.mxu0 0
    %919 = vmatprep.subr.bf16.mxu0 0
    %920 = vmatpush1.bf16.xpose.msra.mxu0 0
    %921 = vmatprep.subr.bf16.mxu0 0
    %922 = vmatpush1.bf16.xpose.msra.mxu0 0
    %923 = vmatprep.mubr.bf16.mxu0 0
    %924 = vmatmul.mubr.bf16.gmra.mrb[0].mxu0 %v865
    %v925 = vpop.f32.mrb[0].mxu0
    %v926 = vadd.f32 %v822, %v925
    %v927 = vpop.f32.mrb[0].mxu0
    %v928 = vpop.f32.mrb[0].mxu0
    %v929 = vpop.f32.mrb[0].mxu0
    %930 = vdwg.mxu0
    %v931 = vxor.u32 %v926, 2147483648
    %v932 = vmul.f32 %v931, 1.442695
    %v933 = vpow.pop %v932
    %v934 = vadd.f32 %v933, 1.0
    %v935 = vrcp.pop %v934
    %v936 = vmul.f32 1.0, %v935
    %937 = vst [vmem:[#allocation2] sm:$0xff] %v936
    // Predicated region
    $region46: #{tpu_custom_call.1} parent=1 // pred_check
      _
    $region47: #{tpu_custom_call.1} parent=1 // pred_check_branch
      %939 = sbr.rel (0) target = $region49
    $region48: #{tpu_custom_call.1} parent=1 // pred_region
      %s941 = ssub.s32 128, 128
      %942 = vsyncadd [#allocation3], %s941
      %s944 = sshll.u32 [#allocation2], 4
      %s945 = int_to_ptr.vmem [resolvable:$true] %s944
      %947 = dma.vmem_to_hbm [thread:$0]  %s945, 128, %s11, [#allocation3]
    $region49: #{tpu_custom_call.1} parent=1 // pred_fallthru
      _
    // Predicated region
    $region50: #{tpu_custom_call.1} parent=1 // pred_check
      _
    $region51: #{tpu_custom_call.1} parent=1 // pred_check_branch
      %949 = sbr.rel (0) target = $region53
    $region52: #{tpu_custom_call.1} parent=1 // pred_region
      %950 = dma.done [#allocation3], 128
    $region53: #{tpu_custom_call.1} parent=1 // pred_fallthru
      _
    %951 = vsyncpa [#allocation3], 1

</llo_original>
